<compile_context>
chip_gen: v7x
topology: tpu7x:2x2x1
jax: 0.10.0
libtpu: 0.0.40
codegen_flags: <defaults>
</compile_context>

<pallas_src>
import jax
import jax.numpy as jnp
from jax.experimental import pallas as pl
from jax.experimental.pallas import tpu as pltpu


def _make_simcc_kernel(tb):
    """Kernel factory: tb = batch elements per grid step."""

    def kernel(feat_ref, wc_ref, m_ref, bias_ref, out_ref):
        # feat_ref: (TB, C, S) f32  -- natural layout, no HBM transpose
        # wc_ref:   (nJ, C)    f32  -- 1x1 conv weight
        # m_ref:    (S, WHp)   f32  -- pool matrix folded into [x_w.T | y_w.T]
        # bias_ref: (nJ, WHp)  f32  -- conv bias folded into [x_b | y_b]
        # out_ref:  (TB, nJ, WHp) f32
        wc = wc_ref[...]          # hoisted: loaded once per grid step
        m = m_ref[...]
        bias = bias_ref[...]
        for b in range(tb):
            # 1x1 conv for batch element b: (nJ, C) @ (C, S) -> (nJ, S), f32 acc.
            conv = jnp.dot(wc, feat_ref[b], preferred_element_type=jnp.float32)
            # Fused pool + x/y heads: (nJ, S) @ (S, WHp) -> (nJ, WHp), f32.
            out = jnp.dot(conv, m, preferred_element_type=jnp.float32)
            out_ref[b] = (out + bias).astype(out_ref.dtype)

    return kernel


def _choose_batch_tile(B, per_b_bytes, target_bytes=2 << 20, max_tb=64):
    """Largest divisor of B with feat block <= target and grid >= 2 (if B >= 2)."""
    best = 1
    for d in range(1, B + 1):
        if B % d != 0 or d > max_tb:
            continue
        steps = B // d
        if d * per_b_bytes <= target_bytes and (steps >= 2 or B == 1):
            best = d
    return best


def simcc_v2_forward(feat_nchw, params, *, w, h, batch_tile=None):
    """feat_nchw: (B, 256, Hf, Wf) feature map from the backbone."""
    B, C, Hf, Wf = feat_nchw.shape
    nJ = params["conv_w"].shape[0]
    assert C == params["conv_w"].shape[1]
    # Matches PyTorch adaptive_avg_pool2d(f, (w // 8, h // 8)):
    # output H = w // 8, output W = h // 8.
    out_h, out_w = w // 8, h // 8
    K = out_h * out_w
    assert Hf % out_h == 0 and Wf % out_w == 0, "uniform adaptive-pool bins only"
    bin_h, bin_w = Hf // out_h, Wf // out_w
    S = Hf * Wf
    WH = w + h
    WHp = ((WH + 127) // 128) * 128          # lane-dense output width

    per_b_bytes = C * S * 4                  # f32 feat bytes per batch element
    TB = _choose_batch_tile(B, per_b_bytes) if batch_tile is None else batch_tile
    assert B % TB == 0, "batch must be divisible by the batch tile"

    # --- plain-JAX glue (f32, tiny): fold pool + both heads into one matrix.
    ys = jnp.arange(Hf) // bin_h
    xs = jnp.arange(Wf) // bin_w
    bin_id = (ys[:, None] * out_w + xs[None, :]).reshape(S)                 # (S,)
    pool_mat = (jax.nn.one_hot(bin_id, K, dtype=jnp.float32)
                / float(bin_h * bin_w))                                      # (S, K)
    w_cat = jnp.concatenate([params["x_w"].T, params["y_w"].T],
                            axis=1).astype(jnp.float32)                      # (K, WH)
    b_cat = jnp.concatenate([params["x_b"], params["y_b"]]).astype(jnp.float32)
    m = pool_mat @ w_cat                                                     # (S, WH)
    bc = params["conv_b"].astype(jnp.float32).reshape(nJ, 1)                 # (nJ, 1)
    # conv-bias contribution folds into the head bias: bc * colsum(M) + b_lin.
    bias = bc * m.sum(axis=0)[None, :] + b_cat[None, :]                      # (nJ, WH)
    # Zero-pad columns so the kernel stores a 128-lane-dense output slab.
    m = jnp.pad(m, ((0, 0), (0, WHp - WH)))                                  # (S, WHp)
    bias = jnp.pad(bias, ((0, 0), (0, WHp - WH)))                            # (nJ, WHp)

    # feat stays in natural layout; reshape is free (contiguous), no transpose.
    feat = feat_nchw.reshape(B, C, S).astype(jnp.float32)                    # (B, C, S)
    wc = params["conv_w"].reshape(nJ, C).astype(jnp.float32)                 # (nJ, C)

    # --- explicit VMEM budget (double-buffered feat/out, single-buffered weights)
    feat_blk = TB * per_b_bytes
    out_blk = TB * nJ * WHp * 4
    wt_bytes = nJ * C * 4 + S * WHp * 4 + nJ * WHp * 4
    vmem_need = 2 * feat_blk + 2 * out_blk + 2 * wt_bytes
    vmem_limit = int(min(max(vmem_need + (4 << 20), 16 << 20), 40 << 20))

    cost = pl.CostEstimate(
        flops=2 * B * nJ * S * (C + WHp),
        transcendentals=0,
        bytes_accessed=int(B * C * S * 4 + B * nJ * WHp * 4 + wt_bytes),
    )

    grid_spec = pltpu.PrefetchScalarGridSpec(
        num_scalar_prefetch=0,
        grid=(B // TB,),
        in_specs=[
            # feat: batch-tiled, natural layout, contiguous HBM blocks.
            pl.BlockSpec((TB, C, S), lambda i: (i, 0, 0)),
            # Batch-invariant operands: constant block index, single-buffered.
            pl.BlockSpec((nJ, C), lambda i: (0, 0), pipeline_mode=pl.Buffered(1)),
            pl.BlockSpec((S, WHp), lambda i: (0, 0), pipeline_mode=pl.Buffered(1)),
            pl.BlockSpec((nJ, WHp), lambda i: (0, 0), pipeline_mode=pl.Buffered(1)),
        ],
        out_specs=pl.BlockSpec((TB, nJ, WHp), lambda i: (i, 0, 0)),
    )

    fused = pl.pallas_call(
        _make_simcc_kernel(TB),
        out_shape=jax.ShapeDtypeStruct((B, nJ, WHp), jnp.float32),
        grid_spec=grid_spec,
        compiler_params=pltpu.CompilerParams(
            dimension_semantics=("parallel",),
            vmem_limit_bytes=vmem_limit,
        ),
        cost_estimate=cost,
    )(feat, wc, m, bias)

    return fused[..., :w], fused[..., w:WH]


def simcc_v2_reference(feat_nchw, params, *, w, h):
    """Pure-JAX (all-f32) reference matching the PyTorch head semantics."""
    nJ = params["conv_w"].shape[0]
    conv = jnp.einsum('bchw,jc->bjhw', feat_nchw.astype(jnp.float32),
                      params["conv_w"].reshape(nJ, -1).astype(jnp.float32))
    conv = conv + params["conv_b"][None, :, None, None]
    B, _, Hf, Wf = conv.shape
    out_h, out_w = w // 8, h // 8
    pooled = conv.reshape(B, nJ, out_h, Hf // out_h, out_w, Wf // out_w)
    pooled = pooled.mean(axis=(3, 5)).reshape(B, nJ, -1)                     # (B, nJ, K)
    px = pooled @ params["x_w"].T + params["x_b"]
    py = pooled @ params["y_w"].T + params["y_b"]
    return px, py


if __name__ == "__main__":
    # Small, module-consistent shapes. Non-square (w, h) exercises the
    # (w//8, h//8) pool-axis ordering of the PyTorch module.
    B, C = 2, 256          # outConv requires 256 input channels
    Hf, Wf = 8, 8          # backbone feature-map spatial size
    w, h = 16, 32          # pool output (w//8, h//8) = (2, 4), K = 8
    nJoints = 4
    K = (w // 8) * (h // 8)

    key = jax.random.PRNGKey(0)
    k_feat, k_cw, k_cb, k_xw, k_xb, k_yw, k_yb = jax.random.split(key, 7)

    feat = jax.random.normal(k_feat, (B, C, Hf, Wf), dtype=jnp.float32)

    params = {
        # conv weight: nn.init.normal_(std=0.001); small nonzero bias so the
        # fused conv-bias path is exercised.
        "conv_w": 0.001 * jax.random.normal(k_cw, (nJoints, C, 1, 1), jnp.float32),
        "conv_b": 0.05 * jax.random.normal(k_cb, (nJoints,), jnp.float32),
        # nn.Linear(K, w) / nn.Linear(K, h): deterministic uniform-ish init
        "x_w": (1.0 / jnp.sqrt(K)) * jax.random.normal(k_xw, (w, K), jnp.float32),
        "x_b": 0.01 * jax.random.normal(k_xb, (w,), jnp.float32),
        "y_w": (1.0 / jnp.sqrt(K)) * jax.random.normal(k_yw, (h, K), jnp.float32),
        "y_b": 0.01 * jax.random.normal(k_yb, (h,), jnp.float32),
    }

    pred_x, pred_y = simcc_v2_forward(feat, params, w=w, h=h)
    jax.block_until_ready((pred_x, pred_y))

    ref_x, ref_y = simcc_v2_reference(feat, params, w=w, h=h)
    assert pred_x.shape == (B, nJoints, w) and pred_y.shape == (B, nJoints, h)
    assert jnp.allclose(pred_x, ref_x, rtol=2e-2, atol=2e-3)
    assert jnp.allclose(pred_y, ref_y, rtol=2e-2, atol=2e-3)

    print("KERNEL_OK")
</pallas_src>

<mosaic_0001>
module attributes {stable_mosaic.version = 11 : i64} {
  func.func @kernel(%arg0: i32, %arg1: memref<1x256x64xf32, #tpu.memory_space<vmem>>, %arg2: memref<4x256xf32, #tpu.memory_space<vmem>>, %arg3: memref<64x128xf32, #tpu.memory_space<vmem>>, %arg4: memref<4x128xf32, #tpu.memory_space<vmem>>, %arg5: memref<1x4x128xf32, #tpu.memory_space<vmem>>) attributes {dimension_semantics = [#tpu.dimension_semantics<parallel>], iteration_bounds = array<i64: 2>, scalar_prefetch = 0 : i64, scratch_operands = 0 : i64, tpu.core_type = #tpu.core_type<tc>, window_params = [{transform_indices = @transform_0, window_bounds = array<i64: 1, 256, 64>}, {pipeline_mode = #tpu.pipeline_mode<synchronous>, transform_indices = @transform_1, window_bounds = array<i64: 4, 256>}, {pipeline_mode = #tpu.pipeline_mode<synchronous>, transform_indices = @transform_2, window_bounds = array<i64: 64, 128>}, {pipeline_mode = #tpu.pipeline_mode<synchronous>, transform_indices = @transform_3, window_bounds = array<i64: 4, 128>}, {transform_indices = @transform_4, window_bounds = array<i64: 1, 4, 128>}]} {
    %c0 = arith.constant 0 : index
    %c0_0 = arith.constant 0 : index
    %0 = vector.load %arg2[%c0, %c0_0] : memref<4x256xf32, #tpu.memory_space<vmem>>, vector<4x256xf32>
    %c0_1 = arith.constant 0 : index
    %c0_2 = arith.constant 0 : index
    %1 = vector.load %arg3[%c0_1, %c0_2] : memref<64x128xf32, #tpu.memory_space<vmem>>, vector<64x128xf32>
    %c0_3 = arith.constant 0 : index
    %c0_4 = arith.constant 0 : index
    %2 = vector.load %arg4[%c0_3, %c0_4] : memref<4x128xf32, #tpu.memory_space<vmem>>, vector<4x128xf32>
    %c0_5 = arith.constant 0 : index
    %c0_6 = arith.constant 0 : index
    %c0_7 = arith.constant 0 : index
    %3 = vector.load %arg1[%c0_5, %c0_6, %c0_7] : memref<1x256x64xf32, #tpu.memory_space<vmem>>, vector<1x256x64xf32>
    %4 = vector.shape_cast %3 : vector<1x256x64xf32> to vector<256x64xf32>
    %cst = arith.constant dense<0.000000e+00> : vector<4x64xf32>
    %5 = tpu.matmul %0, %4, %cst {dimension_numbers = #tpu.dot_dimension_numbers<[1], [0], [0], [1], [0, 0, 1, 1], [], []>} : vector<4x256xf32>, vector<256x64xf32>, vector<4x64xf32> -> vector<4x64xf32>
    %cst_8 = arith.constant dense<0.000000e+00> : vector<4x128xf32>
    %6 = tpu.matmul %5, %1, %cst_8 {dimension_numbers = #tpu.dot_dimension_numbers<[1], [0], [0], [1], [0, 0, 1, 1], [], []>} : vector<4x64xf32>, vector<64x128xf32>, vector<4x128xf32> -> vector<4x128xf32>
    %7 = arith.addf %6, %2 : vector<4x128xf32>
    %c0_9 = arith.constant 0 : index
    %c0_10 = arith.constant 0 : index
    %c0_11 = arith.constant 0 : index
    %8 = vector.load %arg5[%c0_9, %c0_10, %c0_11] : memref<1x4x128xf32, #tpu.memory_space<vmem>>, vector<1x4x128xf32>
    %9 = vector.shape_cast %8 : vector<1x4x128xf32> to vector<4x128xf32>
    %10 = vector.shape_cast %7 : vector<4x128xf32> to vector<1x4x128xf32>
    tpu.vector_store %arg5[%c0_9, %c0_10, %c0_11], %10 {strides = array<i32>} : memref<1x4x128xf32, #tpu.memory_space<vmem>>, vector<1x4x128xf32>,
    return
  }
  func.func @transform_0(%arg0: i32) -> (i32, i32, i32) {
    %c0_i32 = arith.constant 0 : i32
    %c0_i32_0 = arith.constant 0 : i32
    %c0_i32_1 = arith.constant 0 : i32
    return %arg0, %c0_i32, %c0_i32_0 : i32, i32, i32
  }
  func.func @transform_1(%arg0: i32) -> (i32, i32) {
    %c0_i32 = arith.constant 0 : i32
    %c0_i32_0 = arith.constant 0 : i32
    %c0_i32_1 = arith.constant 0 : i32
    return %c0_i32, %c0_i32_0 : i32, i32
  }
  func.func @transform_2(%arg0: i32) -> (i32, i32) {
    %c0_i32 = arith.constant 0 : i32
    %c0_i32_0 = arith.constant 0 : i32
    %c0_i32_1 = arith.constant 0 : i32
    return %c0_i32, %c0_i32_0 : i32, i32
  }
  func.func @transform_3(%arg0: i32) -> (i32, i32) {
    %c0_i32 = arith.constant 0 : i32
    %c0_i32_0 = arith.constant 0 : i32
    %c0_i32_1 = arith.constant 0 : i32
    return %c0_i32, %c0_i32_0 : i32, i32
  }
  func.func @transform_4(%arg0: i32) -> (i32, i32, i32) {
    %c0_i32 = arith.constant 0 : i32
    %c0_i32_0 = arith.constant 0 : i32
    %c0_i32_1 = arith.constant 0 : i32
    return %arg0, %c0_i32, %c0_i32_0 : i32, i32, i32
  }
}

</mosaic_0001>

<llo_original>
// kernel: tpu_custom_call.1
$region0: #{tpu_custom_call.1}
  #allocation0 [shape = 'u32[]', space=smem, size = 0x4, offset = 0x4, fixed_abs, tag = 'smem constant byte address 0x4 - core index']
  #allocation1 [shape = 'u32[144,128]{1,0:T(1,128)}', space=vmem, size = 0x12000, scoped, tag = 'internal scratch']
  %s0 = inlined_call_operand.vmem [shape: f32[2,256,64], index: 0, kind: input, shape index: {}]
  %s1 = inlined_call_operand.vmem [shape: f32[4,256], index: 1, kind: input, shape index: {}]
  %s2 = inlined_call_operand.vmem [shape: f32[64,128], index: 2, kind: input, shape index: {}]
  %s3 = inlined_call_operand.vmem [shape: f32[4,128], index: 3, kind: input, shape index: {}]
  %s4 = inlined_call_operand.hbm [shape: f32[2,4,128], index: 4, kind: output, shape index: {}]
  %s5 = sld [smem:[#allocation0]]
  $region49: #{tpu_custom_call.1} parent=0
    _
  %s7 = ssub.s32 1, %s5
  %s8 = scalar_select 0, %s7, %s5
  $region1: #{tpu_custom_call.1} parent=0
    #allocation2 [shape = 'u8[4096]{0}', space=vmem, size = 0x1000, scoped, tag = 'output window, operand 0']
    #allocation3 [shape = 's32[2]{0}', space=sflag, size = 0x8, scoped, tag = 'scoped memory for tpu_custom_call.1']
    %9 = vsyncpa [#allocation3], 0
    %s10 = scalar_lea.sflag [#allocation3], 1
    %11 = vsyncpa %s10, 0
    loop: start=0, step=1, limit=4
    $region2: #{tpu_custom_call.1} parent=1 // loop_pre_header
      _
    $region3: #{tpu_custom_call.1} parent=1 // loop_header
      %s13 = sphi 0, %s17
      %p14 = scmp.ge.s32.totalorder %s13, 4
      %s23 = sphi 0, %s25
      %s26 = sphi 0, %s23
      %s27 = sphi 0, %s26
      %s43 = sphi 0, %s27
      %s47 = sphi 0, %s47
      %s49 = sphi 0, %s47
      %s50 = sphi 0, %s49
      %s64 = sphi 0, %s50
      %s68 = sphi 0, %s68
      %s70 = sphi 0, %s68
      %s71 = sphi 0, %s70
      %s85 = sphi 0, %s71
      %s89 = sphi 0, %s89
      %s91 = sphi 0, %s89
      %s92 = sphi 0, %s91
      %s106 = sphi 0, %s92
      %s112 = sphi 0, %s114
      %s115 = sphi 0, %s112
      %s116 = sphi 0, %s115
      %s132 = sphi 0, %s116
    $region4: #{tpu_custom_call.1} parent=1 // loop_header_branch
      %16 = sbr.rel (%p14) target = $region8
    $region5: #{tpu_custom_call.1} parent=1 // loop_body
      %s18 = ssub.s32 %s13, 1
      %s19 = ssub.s32 %s13, 2
      %s20 = sadd.s32 %s13, 1
      %s21 = ssub.s32 %s13, %s20
      %p22 = scmp.eq.s32.totalorder %s21, 0
      %s24 = sadd.s32 %s23, 1
      %s25 = scalar_select %p22, %s23, %s24
      %p28 = pneg %p22
      %p29 = scmp.eq.s32.totalorder %s13, 1
      %p30 = por %p28, %p29
      %p31 = scmp.ne.s32.totalorder %s23, %s26
      %p32 = scmp.eq.s32.totalorder %s13, 0
      %p33 = por %p31, %p32
      %p34 = scmp.ne.s32.totalorder %s23, %s26
      %p35 = scmp.eq.s32.totalorder %s18, 1
      %p36 = por %p34, %p35
      %p37 = scmp.ne.s32.totalorder %s26, %s27
      %p38 = scmp.eq.s32.totalorder %s18, 0
      %p39 = por %p37, %p38
      %p40 = scmp.ne.s32.totalorder %s26, %s27
      %p41 = scmp.eq.s32.totalorder %s19, 1
      %p42 = por %p40, %p41
      %p44 = scmp.ne.s32.totalorder %s27, %s43
      %p45 = scmp.eq.s32.totalorder %s19, 0
      %p46 = por %p44, %p45
      %s48 = sadd.s32 %s47, 1
      %p51 = scmp.eq.s32.totalorder %s13, 1
      %p52 = scmp.ne.s32.totalorder %s47, %s49
      %p53 = scmp.eq.s32.totalorder %s13, 0
      %p54 = por %p52, %p53
      %p55 = scmp.ne.s32.totalorder %s47, %s49
      %p56 = scmp.eq.s32.totalorder %s18, 1
      %p57 = por %p55, %p56
      %p58 = scmp.ne.s32.totalorder %s49, %s50
      %p59 = scmp.eq.s32.totalorder %s18, 0
      %p60 = por %p58, %p59
      %p61 = scmp.ne.s32.totalorder %s49, %s50
      %p62 = scmp.eq.s32.totalorder %s19, 1
      %p63 = por %p61, %p62
      %p65 = scmp.ne.s32.totalorder %s50, %s64
      %p66 = scmp.eq.s32.totalorder %s19, 0
      %p67 = por %p65, %p66
      %s69 = sadd.s32 %s68, 1
      %p72 = scmp.eq.s32.totalorder %s13, 1
      %p73 = scmp.ne.s32.totalorder %s68, %s70
      %p74 = scmp.eq.s32.totalorder %s13, 0
      %p75 = por %p73, %p74
      %p76 = scmp.ne.s32.totalorder %s68, %s70
      %p77 = scmp.eq.s32.totalorder %s18, 1
      %p78 = por %p76, %p77
      %p79 = scmp.ne.s32.totalorder %s70, %s71
      %p80 = scmp.eq.s32.totalorder %s18, 0
      %p81 = por %p79, %p80
      %p82 = scmp.ne.s32.totalorder %s70, %s71
      %p83 = scmp.eq.s32.totalorder %s19, 1
      %p84 = por %p82, %p83
      %p86 = scmp.ne.s32.totalorder %s71, %s85
      %p87 = scmp.eq.s32.totalorder %s19, 0
      %p88 = por %p86, %p87
      %s90 = sadd.s32 %s89, 1
      %p93 = scmp.eq.s32.totalorder %s13, 1
      %p94 = scmp.ne.s32.totalorder %s89, %s91
      %p95 = scmp.eq.s32.totalorder %s13, 0
      %p96 = por %p94, %p95
      %p97 = scmp.ne.s32.totalorder %s89, %s91
      %p98 = scmp.eq.s32.totalorder %s18, 1
      %p99 = por %p97, %p98
      %p100 = scmp.ne.s32.totalorder %s91, %s92
      %p101 = scmp.eq.s32.totalorder %s18, 0
      %p102 = por %p100, %p101
      %p103 = scmp.ne.s32.totalorder %s91, %s92
      %p104 = scmp.eq.s32.totalorder %s19, 1
      %p105 = por %p103, %p104
      %p107 = scmp.ne.s32.totalorder %s92, %s106
      %p108 = scmp.eq.s32.totalorder %s19, 0
      %p109 = por %p107, %p108
      %s110 = ssub.s32 %s13, %s20
      %p111 = scmp.eq.s32.totalorder %s110, 0
      %s113 = sadd.s32 %s112, 1
      %s114 = scalar_select %p111, %s112, %s113
      %p117 = pneg %p111
      %p118 = scmp.eq.s32.totalorder %s13, 1
      %p119 = por %p117, %p118
      %p120 = scmp.ne.s32.totalorder %s112, %s115
      %p121 = scmp.eq.s32.totalorder %s13, 0
      %p122 = por %p120, %p121
      %p123 = scmp.ne.s32.totalorder %s112, %s115
      %p124 = scmp.eq.s32.totalorder %s18, 1
      %p125 = por %p123, %p124
      %p126 = scmp.ne.s32.totalorder %s115, %s116
      %p127 = scmp.eq.s32.totalorder %s18, 0
      %p128 = por %p126, %p127
      %p129 = scmp.ne.s32.totalorder %s115, %s116
      %p130 = scmp.eq.s32.totalorder %s19, 1
      %p131 = por %p129, %p130
      %p133 = scmp.ne.s32.totalorder %s116, %s132
      %p134 = scmp.eq.s32.totalorder %s19, 0
      %p135 = por %p133, %p134
      %p136 = scmp.le.s32.totalorder 1, %s13
      %p137 = scmp.lt.s32.totalorder %s13, 3
      %p138 = pnand %p136, %p137
      %p139 = pneg %p138
      // Predicated region
      $region9: #{tpu_custom_call.1} parent=5 // pred_check
        _
      $region10: #{tpu_custom_call.1} parent=5 // pred_check_branch
        %141 = sbr.rel (%p138) target = $region12
      $region11: #{tpu_custom_call.1} parent=5 // pred_region
        %s142 = ssub.s32 %s13, 1
        // Predicated region
        $region13: #{tpu_custom_call.1} parent=11 // pred_check
          %p143 = pneg %p60
        $region14: #{tpu_custom_call.1} parent=11 // pred_check_branch
          %145 = sbr.rel (%p143) target = $region16
        $region15: #{tpu_custom_call.1} parent=11 // pred_region
          _
        $region16: #{tpu_custom_call.1} parent=11 // pred_fallthru
          _
        // Predicated region
        $region17: #{tpu_custom_call.1} parent=11 // pred_check
          %p146 = pneg %p81
        $region18: #{tpu_custom_call.1} parent=11 // pred_check_branch
          %148 = sbr.rel (%p146) target = $region20
        $region19: #{tpu_custom_call.1} parent=11 // pred_region
          _
        $region20: #{tpu_custom_call.1} parent=11 // pred_fallthru
          _
        // Predicated region
        $region21: #{tpu_custom_call.1} parent=11 // pred_check
          %p149 = pneg %p102
        $region22: #{tpu_custom_call.1} parent=11 // pred_check_branch
          %151 = sbr.rel (%p149) target = $region24
        $region23: #{tpu_custom_call.1} parent=11 // pred_region
          _
        $region24: #{tpu_custom_call.1} parent=11 // pred_fallthru
          _
      $region12: #{tpu_custom_call.1} parent=5 // pred_fallthru
        _
      %p152 = scmp.lt.s32.totalorder %s13, 2
      // Predicated region
      $region25: #{tpu_custom_call.1} parent=5 // pred_check
        %p153 = pneg %p152
      $region26: #{tpu_custom_call.1} parent=5 // pred_check_branch
        %155 = sbr.rel (%p153) target = $region28
      $region27: #{tpu_custom_call.1} parent=5 // pred_region
        // Predicated region
        $region29: #{tpu_custom_call.1} parent=27 // pred_check
          %p156 = pneg %p33
        $region30: #{tpu_custom_call.1} parent=27 // pred_check_branch
          %158 = sbr.rel (%p156) target = $region32
        $region31: #{tpu_custom_call.1} parent=27 // pred_region
          %p159 = scmp.lt.s32.totalorder %s13, 1
          %s160 = scalar_select %p159, %s13, 1
          %s161 = smul.addr %s160, 32
          %s162 = smul.addr %s161, 8
          %s163 = scalar_lea.vmem %s0, %s162
        $region32: #{tpu_custom_call.1} parent=27 // pred_fallthru
          _
      $region28: #{tpu_custom_call.1} parent=5 // pred_fallthru
        _
      %p164 = scmp.le.s32.totalorder 1, %s13
      %p165 = scmp.lt.s32.totalorder %s13, 3
      %p166 = pnand %p164, %p165
      %p167 = pneg %p166
      // Predicated region
      $region33: #{tpu_custom_call.1} parent=5 // pred_check
        _
      $region34: #{tpu_custom_call.1} parent=5 // pred_check_branch
        %169 = sbr.rel (%p166) target = $region36
      $region35: #{tpu_custom_call.1} parent=5 // pred_region
        %s170 = ssub.s32 %s13, 1
        %p171 = scmp.lt.s32.totalorder %s18, 1
        %s172 = scalar_select %p171, %s18, 1
        %s173 = smul.addr %s172, 32
        %s174 = smul.addr %s173, 8
        %s175 = scalar_lea.vmem %s0, %s174
        %p176 = pneg %p39
        %p177 = pneg %p36
        %p178 = pneg %p60
        %p179 = pneg %p57
        %p180 = pneg %p81
        %p181 = pneg %p78
        %p182 = pneg %p102
        %p183 = pneg %p99
        %p184 = pneg %p128
        %p185 = pneg %p125
        %s186 = sand.u32 %s115, 1
        %s187 = scalar_lea.sflag [#allocation3], %s186
        %s188 = sand.u32 %s115, 1
        %s189 = smul.addr %s188, 4
        %s190 = scalar_lea.vmem [#allocation2], %s189
        %p191 = scmp.lt.s32.totalorder %s18, 1
        %s192 = scalar_select %p191, %s18, 1
        %s193 = smul.addr %s192, 32
        %s194 = smul.addr %s193, 8
        %s195 = scalar_lea.vmem %s0, %s194
        %v196 = vld [vmem:[%s1] sm:$0xff]
        %v197 = vld [vmem:[%s2] sm:$0xff]
        %v198 = vld [vmem:[%s2 + $0x8] sm:$0xff]
        %v199 = vld [vmem:[%s2 + $0x10] sm:$0xff]
        %v200 = vld [vmem:[%s2 + $0x18] sm:$0xff]
        %v201 = vld [vmem:[%s2 + $0x20] sm:$0xff]
        %v202 = vld [vmem:[%s2 + $0x28] sm:$0xff]
        %v203 = vld [vmem:[%s2 + $0x30] sm:$0xff]
        %v204 = vld [vmem:[%s2 + $0x38] sm:$0xff]
        %v205 = vld [vmem:[%s3] sm:$0xf]
        %v206 = vld [vmem:[%s195] sm:$0xff]
        %v207 = vld [vmem:[%s195 + $0x8] sm:$0xff]
        %v208 = vld [vmem:[%s195 + $0x10] sm:$0xff]
        %v209 = vld [vmem:[%s195 + $0x18] sm:$0xff]
        %v210 = vld [vmem:[%s195 + $0x20] sm:$0xff]
        %v211 = vld [vmem:[%s195 + $0x28] sm:$0xff]
        %v212 = vld [vmem:[%s195 + $0x30] sm:$0xff]
        %v213 = vld [vmem:[%s195 + $0x38] sm:$0xff]
        %v214 = vld [vmem:[%s195 + $0x40] sm:$0xff]
        %v215 = vld [vmem:[%s195 + $0x48] sm:$0xff]
        %v216 = vld [vmem:[%s195 + $0x50] sm:$0xff]
        %v217 = vld [vmem:[%s195 + $0x58] sm:$0xff]
        %v218 = vld [vmem:[%s195 + $0x60] sm:$0xff]
        %v219 = vld [vmem:[%s195 + $0x68] sm:$0xff]
        %v220 = vld [vmem:[%s195 + $0x70] sm:$0xff]
        %v221 = vld [vmem:[%s195 + $0x78] sm:$0xff]
        %v222 = vld [vmem:[%s195 + $0x80] sm:$0xff]
        %v223 = vld [vmem:[%s195 + $0x88] sm:$0xff]
        %v224 = vld [vmem:[%s195 + $0x90] sm:$0xff]
        %v225 = vld [vmem:[%s195 + $0x98] sm:$0xff]
        %v226 = vld [vmem:[%s195 + $0xa0] sm:$0xff]
        %v227 = vld [vmem:[%s195 + $0xa8] sm:$0xff]
        %v228 = vld [vmem:[%s195 + $0xb0] sm:$0xff]
        %v229 = vld [vmem:[%s195 + $0xb8] sm:$0xff]
        %v230 = vld [vmem:[%s195 + $0xc0] sm:$0xff]
        %v231 = vld [vmem:[%s195 + $0xc8] sm:$0xff]
        %v232 = vld [vmem:[%s195 + $0xd0] sm:$0xff]
        %v233 = vld [vmem:[%s195 + $0xd8] sm:$0xff]
        %v234 = vld [vmem:[%s195 + $0xe0] sm:$0xff]
        %v235 = vld [vmem:[%s195 + $0xe8] sm:$0xff]
        %v236 = vld [vmem:[%s195 + $0xf0] sm:$0xff]
        %v237 = vld [vmem:[%s195 + $0xf8] sm:$0xff]
        %v239 = vcombine.high %v196, %v196
        %241 = vmatprep.subr.mxu0 0.0
        %242 = vmatpush1.msra.mxu0 %v206
        %243 = vmatprep.subr.mxu0 0.0
        %244 = vmatpush1.msra.mxu0 %v207
        %245 = vmatprep.subr.mxu0 0.0
        %246 = vmatpush1.msra.mxu0 %v208
        %247 = vmatprep.subr.mxu0 0.0
        %248 = vmatpush1.msra.mxu0 %v209
        %249 = vmatprep.subr.mxu0 0.0
        %250 = vmatpush1.msra.mxu0 %v210
        %251 = vmatprep.subr.mxu0 0.0
        %252 = vmatpush1.msra.mxu0 %v211
        %253 = vmatprep.subr.mxu0 0.0
        %254 = vmatpush1.msra.mxu0 %v212
        %255 = vmatprep.subr.mxu0 0.0
        %256 = vmatpush1.msra.mxu0 %v213
        %257 = vmatprep.subr.mxu0 0.0
        %258 = vmatpush1.msra.mxu0 %v214
        %259 = vmatprep.subr.mxu0 0.0
        %260 = vmatpush1.msra.mxu0 %v215
        %261 = vmatprep.subr.mxu0 0.0
        %262 = vmatpush1.msra.mxu0 %v216
        %263 = vmatprep.subr.mxu0 0.0
        %264 = vmatpush1.msra.mxu0 %v217
        %265 = vmatprep.subr.mxu0 0.0
        %266 = vmatpush1.msra.mxu0 %v218
        %267 = vmatprep.subr.mxu0 0.0
        %268 = vmatpush1.msra.mxu0 %v219
        %269 = vmatprep.subr.mxu0 0.0
        %270 = vmatpush1.msra.mxu0 %v220
        %271 = vmatprep.subr.mxu0 0.0
        %272 = vmatpush1.msra.mxu0 %v221
        %273 = vmatprep.subr.mxu0 0.0
        %274 = vmatpush1.msra.mxu0 %v222
        %275 = vmatprep.subr.mxu0 0.0
        %276 = vmatpush1.msra.mxu0 %v223
        %277 = vmatprep.subr.mxu0 0.0
        %278 = vmatpush1.msra.mxu0 %v224
        %279 = vmatprep.subr.mxu0 0.0
        %280 = vmatpush1.msra.mxu0 %v225
        %281 = vmatprep.subr.mxu0 0.0
        %282 = vmatpush1.msra.mxu0 %v226
        %283 = vmatprep.subr.mxu0 0.0
        %284 = vmatpush1.msra.mxu0 %v227
        %285 = vmatprep.subr.mxu0 0.0
        %286 = vmatpush1.msra.mxu0 %v228
        %287 = vmatprep.subr.mxu0 0.0
        %288 = vmatpush1.msra.mxu0 %v229
        %289 = vmatprep.subr.mxu0 0.0
        %290 = vmatpush1.msra.mxu0 %v230
        %291 = vmatprep.subr.mxu0 0.0
        %292 = vmatpush1.msra.mxu0 %v231
        %293 = vmatprep.subr.mxu0 0.0
        %294 = vmatpush1.msra.mxu0 %v232
        %295 = vmatprep.subr.mxu0 0.0
        %296 = vmatpush1.msra.mxu0 %v233
        %297 = vmatprep.subr.mxu0 0.0
        %298 = vmatpush1.msra.mxu0 %v234
        %299 = vmatprep.subr.mxu0 0.0
        %300 = vmatpush1.msra.mxu0 %v235
        %301 = vmatprep.subr.mxu0 0.0
        %302 = vmatpush1.msra.mxu0 %v236
        %303 = vmatprep.subr.mxu0 0.0
        %304 = vmatpush1.msra.mxu0 %v237
        %305 = vmatprep.mubr.f32.mxu0 %v239
        %306 = vmatmul.mubr.f32.gmra.mrb[0].mxu0 %v196
        %v307 = vpop.f32.mrb[0].mxu0
        %v308 = vadd.f32 0.0, %v307
        %v309 = vpop.f32.mrb[0].mxu0
        %310 = vdwg.mxu0
        %vm311 = vcmask 523264
        %v313 = vsel %vm311, %v308, 0
        %315 = vmatprep.subr.mxu0 0.0
        %316 = vmatpush1.msra.mxu0 %v197
        %317 = vmatprep.subr.mxu0 0.0
        %318 = vmatpush1.msra.mxu0 %v198
        %319 = vmatprep.subr.mxu0 0.0
        %320 = vmatpush1.msra.mxu0 %v199
        %321 = vmatprep.subr.mxu0 0.0
        %322 = vmatpush1.msra.mxu0 %v200
        %323 = vmatprep.subr.mxu0 0.0
        %324 = vmatpush1.msra.mxu0 %v201
        %325 = vmatprep.subr.mxu0 0.0
        %326 = vmatpush1.msra.mxu0 %v202
        %327 = vmatprep.subr.mxu0 0.0
        %328 = vmatpush1.msra.mxu0 %v203
        %329 = vmatprep.subr.mxu0 0.0
        %330 = vmatpush1.msra.mxu0 %v204
        %331 = vmatprep.subr.mxu0 0.0
        %332 = vmatpush1.msra.mxu0 0.0
        %333 = vmatprep.subr.mxu0 0.0
        %334 = vmatpush1.msra.mxu0 0.0
        %335 = vmatprep.subr.mxu0 0.0
        %336 = vmatpush1.msra.mxu0 0.0
        %337 = vmatprep.subr.mxu0 0.0
        %338 = vmatpush1.msra.mxu0 0.0
        %339 = vmatprep.subr.mxu0 0.0
        %340 = vmatpush1.msra.mxu0 0.0
        %341 = vmatprep.subr.mxu0 0.0
        %342 = vmatpush1.msra.mxu0 0.0
        %343 = vmatprep.subr.mxu0 0.0
        %344 = vmatpush1.msra.mxu0 0.0
        %345 = vmatprep.subr.mxu0 0.0
        %346 = vmatpush1.msra.mxu0 0.0
        %347 = vmatprep.subr.mxu0 0.0
        %348 = vmatpush1.msra.mxu0 0.0
        %349 = vmatprep.subr.mxu0 0.0
        %350 = vmatpush1.msra.mxu0 0.0
        %351 = vmatprep.subr.mxu0 0.0
        %352 = vmatpush1.msra.mxu0 0.0
        %353 = vmatprep.subr.mxu0 0.0
        %354 = vmatpush1.msra.mxu0 0.0
        %355 = vmatprep.subr.mxu0 0.0
        %356 = vmatpush1.msra.mxu0 0.0
        %357 = vmatprep.subr.mxu0 0.0
        %358 = vmatpush1.msra.mxu0 0.0
        %359 = vmatprep.subr.mxu0 0.0
        %360 = vmatpush1.msra.mxu0 0.0
        %361 = vmatprep.subr.mxu0 0.0
        %362 = vmatpush1.msra.mxu0 0.0
        %363 = vmatprep.subr.mxu0 0.0
        %364 = vmatpush1.msra.mxu0 0.0
        %365 = vmatprep.subr.mxu0 0.0
        %366 = vmatpush1.msra.mxu0 0.0
        %367 = vmatprep.subr.mxu0 0.0
        %368 = vmatpush1.msra.mxu0 0.0
        %369 = vmatprep.subr.mxu0 0.0
        %370 = vmatpush1.msra.mxu0 0.0
        %371 = vmatprep.subr.mxu0 0.0
        %372 = vmatpush1.msra.mxu0 0.0
        %373 = vmatprep.subr.mxu0 0.0
        %374 = vmatpush1.msra.mxu0 0.0
        %375 = vmatprep.subr.mxu0 0.0
        %376 = vmatpush1.msra.mxu0 0.0
        %377 = vmatprep.subr.mxu0 0.0
        %378 = vmatpush1.msra.mxu0 0.0
        %379 = vmatprep.mubr.f32.mxu0 0.0
        %380 = vmatmul.mubr.f32.gmra.mrb[0].mxu0 %v313
        %v381 = vpop.f32.mrb[0].mxu0
        %v382 = vadd.f32 %v205, %v381
        %v383 = vpop.f32.mrb[0].mxu0
        %384 = vdwg.mxu0
        %385 = vst [vmem:[%s190] sm:$0xf] %v382
        %s386 = sand.u32 %s115, 1
        %s387 = scalar_lea.sflag [#allocation3], %s386
        %s388 = sand.u32 %s115, 1
        %s389 = smul.addr %s388, 4
        %s390 = scalar_lea.vmem [#allocation2], %s389
        // Predicated region
        $region37: #{tpu_custom_call.1} parent=35 // pred_check
          %p391 = pneg %p125
        $region38: #{tpu_custom_call.1} parent=35 // pred_check_branch
          %393 = sbr.rel (%p391) target = $region40
        $region39: #{tpu_custom_call.1} parent=35 // pred_region
          %s395 = ssub.s32 64, 64
          %396 = vsyncadd %s387, %s395
          %s397 = smul.addr %s18, 64
          %s398 = scalar_lea.hbm %s4, %s397
          %s400 = sshll.u32 %s390, 4
          %s401 = int_to_ptr.vmem [resolvable:$true] %s400
          %403 = dma.vmem_to_hbm [thread:$0]  %s401, 64, %s398, %s387
        $region40: #{tpu_custom_call.1} parent=35 // pred_fallthru
          _
      $region36: #{tpu_custom_call.1} parent=5 // pred_fallthru
        _
      %p404 = scmp.le.s32.totalorder 2, %s13
      // Predicated region
      $region41: #{tpu_custom_call.1} parent=5 // pred_check
        %p405 = pneg %p404
      $region42: #{tpu_custom_call.1} parent=5 // pred_check_branch
        %407 = sbr.rel (%p405) target = $region44
      $region43: #{tpu_custom_call.1} parent=5 // pred_region
        %s408 = ssub.s32 %s13, 2
        // Predicated region
        $region45: #{tpu_custom_call.1} parent=43 // pred_check
          %p409 = pneg %p131
        $region46: #{tpu_custom_call.1} parent=43 // pred_check_branch
          %411 = sbr.rel (%p409) target = $region48
        $region47: #{tpu_custom_call.1} parent=43 // pred_region
          %s412 = sand.u32 %s116, 1
          %s413 = scalar_lea.sflag [#allocation3], %s412
          %s414 = sand.u32 %s116, 1
          %s415 = smul.addr %s414, 4
          %s416 = scalar_lea.vmem [#allocation2], %s415
          %417 = dma.done %s413, 64
        $region48: #{tpu_custom_call.1} parent=43 // pred_fallthru
          _
      $region44: #{tpu_custom_call.1} parent=5 // pred_fallthru
        _
    $region6: #{tpu_custom_call.1} parent=1 // loop_footer
      %s17 = sadd.s32 1, %s13
    $region7: #{tpu_custom_call.1} parent=1 // loop_footer_branch
      %12 = sbr.rel target = $region3
    $region8: #{tpu_custom_call.1} parent=1 // loop_exit
      _
    %418 = vsyncpa [#allocation3], 1
    %s419 = scalar_lea.sflag [#allocation3], 1
    %420 = vsyncpa %s419, 1

</llo_original>
